<compile_context>
chip_gen: v5e
topology: v5e:2x2
jax: 0.10.0
libtpu: 0.0.40
codegen_flags: <defaults>
</compile_context>

<pallas_src>
import math

import jax
import jax.numpy as jnp
from jax.experimental import pallas as pl
from jax.experimental.pallas import tpu as pltpu


def _se_kernel(x_ref, w1_ref, w2_ref, out_ref):
    """One row tile of: out = x * sigmoid(relu(x @ W1t) @ W2t)."""
    # (tm, CL) @ (CL, CrL) -> (tm, CrL), f32 accumulation on the MXU.
    h = jnp.dot(x_ref[...], w1_ref[...], preferred_element_type=jnp.float32)
    h = jnp.maximum(h, 0.0)                                     # ReLU
    # (tm, CrL) @ (CrL, CL) -> (tm, CL), f32 accumulation.
    y = jnp.dot(h.astype(w2_ref.dtype), w2_ref[...],
                preferred_element_type=jnp.float32)
    gate = jax.nn.sigmoid(y)                                    # exp -> EUP slot
    # Re-read x for the final multiply (short live range -> fewer vregs/spills)
    # and gate in the input dtype (bf16 VALU on v6e/v7x; no-op for f32).
    out_ref[...] = x_ref[...] * gate.astype(out_ref.dtype)


def se_layer(x, w1, w2, *, block_rows=None, tile_vmem_budget_bytes=24 << 20):
    """SELayer forward.

    x : (..., C)      input
    w1: (C // r, C)   PyTorch fc[0].weight (Linear1, no bias)
    w2: (C, C // r)   PyTorch fc[2].weight (Linear2, no bias)
    Returns an array with the same shape/dtype as x.
    """
    C = x.shape[-1]
    Cr = w1.shape[0]
    assert w1.shape == (Cr, C), w1.shape
    assert w2.shape == (C, Cr), w2.shape

    lead = x.shape[:-1]
    M = math.prod(lead) if lead else 1
    if M == 0:                       # degenerate empty input
        return x

    xf = x.reshape(M, C)
    w1t = w1.T                       # (C, Cr)
    w2t = w2.T                       # (Cr, C)

    # ---- Lane-dense packing: fold k rows into the 128-lane axis when C < 128.
    k = 128 // C if (C < 128 and 128 % C == 0) else 1
    if k > 1:
        pad = (-M) % k
        if pad:
            xf = jnp.pad(xf, ((0, pad), (0, 0)))
        Mp = xf.shape[0] // k
        xp = xf.reshape(Mp, k * C)
        # Block-diagonal weights (built once; zeros keep rows independent).
        eye1 = jnp.eye(k, dtype=w1t.dtype)
        eye2 = jnp.eye(k, dtype=w2t.dtype)
        W1 = jnp.einsum("ab,ij->aibj", eye1, w1t).reshape(k * C, k * Cr)
        W2 = jnp.einsum("ab,ij->aibj", eye2, w2t).reshape(k * Cr, k * C)
    else:
        Mp, xp, W1, W2 = M, xf, w1t, w2t

    C_lane = k * C
    Cr_lane = k * Cr
    itemsize = jnp.dtype(x.dtype).itemsize
    w_itemsize = jnp.dtype(w1.dtype).itemsize
    sub = 8 * max(1, 4 // itemsize)          # 8 (f32) / 16 (bf16) / 32 (int8)

    # ---- VMEM-budget-driven row tile:
    #   double-buffered in+out tiles ~ 4*tm*C_lane*itemsize, plus
    #   double-buffered resident weights ~ 4*C_lane*Cr_lane*w_itemsize.
    if block_rows is None:
        w_bytes = 4 * C_lane * Cr_lane * w_itemsize
        budget = max(tile_vmem_budget_bytes - w_bytes,
                     4 * sub * C_lane * itemsize)
        tm = budget // (4 * C_lane * itemsize)
        tm = max(sub, min(1024, (tm // sub) * sub))
    else:
        tm = max(sub, (block_rows // sub) * sub)
    tm = min(tm, Mp)                         # full-dim block is always legal

    grid = (pl.cdiv(Mp, tm),)                # ragged last tile handled by Pallas

    cost = pl.CostEstimate(
        flops=4 * Mp * C_lane * Cr_lane,
        transcendentals=Mp * C_lane,
        bytes_accessed=2 * Mp * C_lane * itemsize
        + 2 * C_lane * Cr_lane * w_itemsize,
    )

    out = pl.pallas_call(
        _se_kernel,
        out_shape=jax.ShapeDtypeStruct((Mp, C_lane), x.dtype),
        grid=grid,
        in_specs=[
            pl.BlockSpec((tm, C_lane), lambda i: (i, 0)),        # x row tile
            pl.BlockSpec((C_lane, Cr_lane), lambda i: (0, 0)),   # W1t (resident)
            pl.BlockSpec((Cr_lane, C_lane), lambda i: (0, 0)),   # W2t (resident)
        ],
        out_specs=pl.BlockSpec((tm, C_lane), lambda i: (i, 0)),
        compiler_params=pltpu.CompilerParams(
            dimension_semantics=("parallel",),   # shard rows across TCs
            vmem_limit_bytes=32 << 20,
        ),
        cost_estimate=cost,
    )(xp, W1, W2)

    if k > 1:
        out = out.reshape(Mp * k, C)[:M]
    return out.reshape(x.shape)


def _reference(x, w1, w2):
    # Pure-JAX reference mirroring the PyTorch forward.
    h = jax.nn.relu(x @ w1.T)
    y = jax.nn.sigmoid(h @ w2.T)
    return x * y


if __name__ == "__main__":
    # Small shapes consistent with the module: channel=64, reduction=16.
    # B*N = 99 exercises: lane packing (k=2), the odd-row pad, a multi-tile
    # pipelined grid, and a ragged last tile.
    B, N, C, R = 3, 33, 64, 16
    Cr = C // R

    key = jax.random.PRNGKey(0)
    k1, k2, k3 = jax.random.split(key, 3)
    x = jax.random.normal(k1, (B, N, C), dtype=jnp.float32)
    w1 = jax.random.normal(k2, (Cr, C), dtype=jnp.float32) * (1.0 / math.sqrt(C))
    w2 = jax.random.normal(k3, (C, Cr), dtype=jnp.float32) * (1.0 / math.sqrt(Cr))

    # block_rows=16 -> packed rows tiled as 16,16,16,2 (grid=(4,)).
    out = se_layer(x, w1, w2, block_rows=16)
    out = jax.block_until_ready(out)

    ref = _reference(x, w1, w2)
    assert out.shape == x.shape, out.shape
    assert jnp.allclose(out, ref, atol=1e-5, rtol=1e-5), "mismatch vs reference"

    # Also exercise the default (VMEM-budget-driven) tile selection path.
    out2 = jax.block_until_ready(se_layer(x, w1, w2))
    assert jnp.allclose(out2, ref, atol=1e-5, rtol=1e-5), "mismatch (default tm)"

    print("KERNEL_OK")
</pallas_src>

<mosaic_0001>
module attributes {stable_mosaic.version = 11 : i64} {
  func.func @_se_kernel(%arg0: i32, %arg1: memref<16x128xf32, #tpu.memory_space<vmem>>, %arg2: memref<128x8xf32, #tpu.memory_space<vmem>>, %arg3: memref<8x128xf32, #tpu.memory_space<vmem>>, %arg4: memref<16x128xf32, #tpu.memory_space<vmem>>) attributes {dimension_semantics = [#tpu.dimension_semantics<parallel>], iteration_bounds = array<i64: 4>, scalar_prefetch = 0 : i64, scratch_operands = 0 : i64, tpu.core_type = #tpu.core_type<tc>, window_params = [{transform_indices = @transform_0, window_bounds = array<i64: 16, 128>}, {pipeline_mode = #tpu.pipeline_mode<synchronous>, transform_indices = @transform_1, window_bounds = array<i64: 128, 8>}, {pipeline_mode = #tpu.pipeline_mode<synchronous>, transform_indices = @transform_2, window_bounds = array<i64: 8, 128>}, {transform_indices = @transform_3, window_bounds = array<i64: 16, 128>}]} {
    %c0 = arith.constant 0 : index
    %c0_0 = arith.constant 0 : index
    %0 = vector.load %arg1[%c0, %c0_0] : memref<16x128xf32, #tpu.memory_space<vmem>>, vector<16x128xf32>
    %c0_1 = arith.constant 0 : index
    %c0_2 = arith.constant 0 : index
    %1 = vector.load %arg2[%c0_1, %c0_2] : memref<128x8xf32, #tpu.memory_space<vmem>>, vector<128x8xf32>
    %cst = arith.constant dense<0.000000e+00> : vector<16x8xf32>
    %2 = tpu.matmul %0, %1, %cst {dimension_numbers = #tpu.dot_dimension_numbers<[1], [0], [0], [1], [0, 0, 1, 1], [], []>} : vector<16x128xf32>, vector<128x8xf32>, vector<16x8xf32> -> vector<16x8xf32>
    %cst_3 = arith.constant 0.000000e+00 : f32
    %3 = vector.broadcast %cst_3 : f32 to vector<16x8xf32>
    %4 = arith.maximumf %2, %3 : vector<16x8xf32>
    %c0_4 = arith.constant 0 : index
    %c0_5 = arith.constant 0 : index
    %5 = vector.load %arg3[%c0_4, %c0_5] : memref<8x128xf32, #tpu.memory_space<vmem>>, vector<8x128xf32>
    %cst_6 = arith.constant dense<0.000000e+00> : vector<16x128xf32>
    %6 = tpu.matmul %4, %5, %cst_6 {dimension_numbers = #tpu.dot_dimension_numbers<[1], [0], [0], [1], [0, 0, 1, 1], [], []>} : vector<16x8xf32>, vector<8x128xf32>, vector<16x128xf32> -> vector<16x128xf32>
    %7 = arith.negf %6 : vector<16x128xf32>
    %8 = math.exp %7 : vector<16x128xf32>
    %cst_7 = arith.constant 1.000000e+00 : f32
    %9 = vector.broadcast %cst_7 : f32 to vector<16x128xf32>
    %10 = arith.addf %9, %8 : vector<16x128xf32>
    %11 = arith.divf %9, %10 : vector<16x128xf32>
    %c0_8 = arith.constant 0 : index
    %c0_9 = arith.constant 0 : index
    %12 = vector.load %arg1[%c0_8, %c0_9] : memref<16x128xf32, #tpu.memory_space<vmem>>, vector<16x128xf32>
    %13 = arith.mulf %12, %11 : vector<16x128xf32>
    %c0_10 = arith.constant 0 : index
    %c0_11 = arith.constant 0 : index
    %14 = vector.load %arg4[%c0_10, %c0_11] : memref<16x128xf32, #tpu.memory_space<vmem>>, vector<16x128xf32>
    tpu.vector_store %arg4[%c0_10, %c0_11], %13 {strides = array<i32>} : memref<16x128xf32, #tpu.memory_space<vmem>>, vector<16x128xf32>,
    return
  }
  func.func @transform_0(%arg0: i32) -> (i32, i32) {
    %c0_i32 = arith.constant 0 : i32
    %c0_i32_0 = arith.constant 0 : i32
    return %arg0, %c0_i32 : i32, i32
  }
  func.func @transform_1(%arg0: i32) -> (i32, i32) {
    %c0_i32 = arith.constant 0 : i32
    %c0_i32_0 = arith.constant 0 : i32
    %c0_i32_1 = arith.constant 0 : i32
    return %c0_i32, %c0_i32_0 : i32, i32
  }
  func.func @transform_2(%arg0: i32) -> (i32, i32) {
    %c0_i32 = arith.constant 0 : i32
    %c0_i32_0 = arith.constant 0 : i32
    %c0_i32_1 = arith.constant 0 : i32
    return %c0_i32, %c0_i32_0 : i32, i32
  }
  func.func @transform_3(%arg0: i32) -> (i32, i32) {
    %c0_i32 = arith.constant 0 : i32
    %c0_i32_0 = arith.constant 0 : i32
    return %arg0, %c0_i32 : i32, i32
  }
}

</mosaic_0001>

<llo_original>
// kernel: tpu_custom_call.1
$region0: #{tpu_custom_call.1}
  #allocation0 [shape = 'u32[]', space=smem, size = 0x4, offset = 0x4, fixed_abs, tag = 'smem constant byte address 0x4 - core index']
  #allocation1 [shape = 'u32[72,128]{1,0:T(1,128)}', space=vmem, size = 0x9000, scoped, tag = 'internal scratch']
  %s0 = inlined_call_operand.vmem [shape: f32[50,128], index: 0, kind: input, shape index: {}]
  %s1 = inlined_call_operand.vmem [shape: f32[128,8], index: 1, kind: input, shape index: {}]
  %s2 = inlined_call_operand.vmem [shape: f32[8,128], index: 2, kind: input, shape index: {}]
  %s3 = inlined_call_operand.hbm [shape: f32[50,128], index: 3, kind: output, shape index: {}]
  %s4 = sld [smem:[#allocation0]]
  $region45: #{tpu_custom_call.1} parent=0
    _
  %s6 = ssub.s32 1, %s4
  %s7 = scalar_select 0, %s6, %s4
  $region1: #{tpu_custom_call.1} parent=0
    #allocation2 [shape = 'u8[16384]{0}', space=vmem, size = 0x4000, scoped, tag = 'output window, operand 0']
    #allocation3 [shape = 's32[2]{0}', space=sflag, size = 0x8, scoped, tag = 'scoped memory for tpu_custom_call.1']
    %8 = vsyncpa [#allocation3], 0
    %s9 = scalar_lea.sflag [#allocation3], 1
    %10 = vsyncpa %s9, 0
    loop: start=0, step=1, limit=6
    $region2: #{tpu_custom_call.1} parent=1 // loop_pre_header
      _
    $region3: #{tpu_custom_call.1} parent=1 // loop_header
      %s12 = sphi 0, %s16
      %p13 = scmp.ge.s32.totalorder %s12, 6
      %s22 = sphi 0, %s24
      %s25 = sphi 0, %s22
      %s26 = sphi 0, %s25
      %s42 = sphi 0, %s26
      %s46 = sphi 0, %s46
      %s48 = sphi 0, %s46
      %s49 = sphi 0, %s48
      %s63 = sphi 0, %s49
      %s67 = sphi 0, %s67
      %s69 = sphi 0, %s67
      %s70 = sphi 0, %s69
      %s84 = sphi 0, %s70
      %s90 = sphi 0, %s92
      %s93 = sphi 0, %s90
      %s94 = sphi 0, %s93
      %s110 = sphi 0, %s94
    $region4: #{tpu_custom_call.1} parent=1 // loop_header_branch
      %15 = sbr.rel (%p13) target = $region8
    $region5: #{tpu_custom_call.1} parent=1 // loop_body
      %s17 = ssub.s32 %s12, 1
      %s18 = ssub.s32 %s12, 2
      %s19 = sadd.s32 %s12, 1
      %s20 = ssub.s32 %s12, %s19
      %p21 = scmp.eq.s32.totalorder %s20, 0
      %s23 = sadd.s32 %s22, 1
      %s24 = scalar_select %p21, %s22, %s23
      %p27 = pneg %p21
      %p28 = scmp.eq.s32.totalorder %s12, 3
      %p29 = por %p27, %p28
      %p30 = scmp.ne.s32.totalorder %s22, %s25
      %p31 = scmp.eq.s32.totalorder %s12, 0
      %p32 = por %p30, %p31
      %p33 = scmp.ne.s32.totalorder %s22, %s25
      %p34 = scmp.eq.s32.totalorder %s17, 3
      %p35 = por %p33, %p34
      %p36 = scmp.ne.s32.totalorder %s25, %s26
      %p37 = scmp.eq.s32.totalorder %s17, 0
      %p38 = por %p36, %p37
      %p39 = scmp.ne.s32.totalorder %s25, %s26
      %p40 = scmp.eq.s32.totalorder %s18, 3
      %p41 = por %p39, %p40
      %p43 = scmp.ne.s32.totalorder %s26, %s42
      %p44 = scmp.eq.s32.totalorder %s18, 0
      %p45 = por %p43, %p44
      %s47 = sadd.s32 %s46, 1
      %p50 = scmp.eq.s32.totalorder %s12, 3
      %p51 = scmp.ne.s32.totalorder %s46, %s48
      %p52 = scmp.eq.s32.totalorder %s12, 0
      %p53 = por %p51, %p52
      %p54 = scmp.ne.s32.totalorder %s46, %s48
      %p55 = scmp.eq.s32.totalorder %s17, 3
      %p56 = por %p54, %p55
      %p57 = scmp.ne.s32.totalorder %s48, %s49
      %p58 = scmp.eq.s32.totalorder %s17, 0
      %p59 = por %p57, %p58
      %p60 = scmp.ne.s32.totalorder %s48, %s49
      %p61 = scmp.eq.s32.totalorder %s18, 3
      %p62 = por %p60, %p61
      %p64 = scmp.ne.s32.totalorder %s49, %s63
      %p65 = scmp.eq.s32.totalorder %s18, 0
      %p66 = por %p64, %p65
      %s68 = sadd.s32 %s67, 1
      %p71 = scmp.eq.s32.totalorder %s12, 3
      %p72 = scmp.ne.s32.totalorder %s67, %s69
      %p73 = scmp.eq.s32.totalorder %s12, 0
      %p74 = por %p72, %p73
      %p75 = scmp.ne.s32.totalorder %s67, %s69
      %p76 = scmp.eq.s32.totalorder %s17, 3
      %p77 = por %p75, %p76
      %p78 = scmp.ne.s32.totalorder %s69, %s70
      %p79 = scmp.eq.s32.totalorder %s17, 0
      %p80 = por %p78, %p79
      %p81 = scmp.ne.s32.totalorder %s69, %s70
      %p82 = scmp.eq.s32.totalorder %s18, 3
      %p83 = por %p81, %p82
      %p85 = scmp.ne.s32.totalorder %s70, %s84
      %p86 = scmp.eq.s32.totalorder %s18, 0
      %p87 = por %p85, %p86
      %s88 = ssub.s32 %s12, %s19
      %p89 = scmp.eq.s32.totalorder %s88, 0
      %s91 = sadd.s32 %s90, 1
      %s92 = scalar_select %p89, %s90, %s91
      %p95 = pneg %p89
      %p96 = scmp.eq.s32.totalorder %s12, 3
      %p97 = por %p95, %p96
      %p98 = scmp.ne.s32.totalorder %s90, %s93
      %p99 = scmp.eq.s32.totalorder %s12, 0
      %p100 = por %p98, %p99
      %p101 = scmp.ne.s32.totalorder %s90, %s93
      %p102 = scmp.eq.s32.totalorder %s17, 3
      %p103 = por %p101, %p102
      %p104 = scmp.ne.s32.totalorder %s93, %s94
      %p105 = scmp.eq.s32.totalorder %s17, 0
      %p106 = por %p104, %p105
      %p107 = scmp.ne.s32.totalorder %s93, %s94
      %p108 = scmp.eq.s32.totalorder %s18, 3
      %p109 = por %p107, %p108
      %p111 = scmp.ne.s32.totalorder %s94, %s110
      %p112 = scmp.eq.s32.totalorder %s18, 0
      %p113 = por %p111, %p112
      %p114 = scmp.le.s32.totalorder 1, %s12
      %p115 = scmp.lt.s32.totalorder %s12, 5
      %p116 = pnand %p114, %p115
      %p117 = pneg %p116
      // Predicated region
      $region9: #{tpu_custom_call.1} parent=5 // pred_check
        _
      $region10: #{tpu_custom_call.1} parent=5 // pred_check_branch
        %119 = sbr.rel (%p116) target = $region12
      $region11: #{tpu_custom_call.1} parent=5 // pred_region
        %s120 = ssub.s32 %s12, 1
        // Predicated region
        $region13: #{tpu_custom_call.1} parent=11 // pred_check
          %p121 = pneg %p59
        $region14: #{tpu_custom_call.1} parent=11 // pred_check_branch
          %123 = sbr.rel (%p121) target = $region16
        $region15: #{tpu_custom_call.1} parent=11 // pred_region
          _
        $region16: #{tpu_custom_call.1} parent=11 // pred_fallthru
          _
        // Predicated region
        $region17: #{tpu_custom_call.1} parent=11 // pred_check
          %p124 = pneg %p80
        $region18: #{tpu_custom_call.1} parent=11 // pred_check_branch
          %126 = sbr.rel (%p124) target = $region20
        $region19: #{tpu_custom_call.1} parent=11 // pred_region
          _
        $region20: #{tpu_custom_call.1} parent=11 // pred_fallthru
          _
      $region12: #{tpu_custom_call.1} parent=5 // pred_fallthru
        _
      %p127 = scmp.lt.s32.totalorder %s12, 4
      // Predicated region
      $region21: #{tpu_custom_call.1} parent=5 // pred_check
        %p128 = pneg %p127
      $region22: #{tpu_custom_call.1} parent=5 // pred_check_branch
        %130 = sbr.rel (%p128) target = $region24
      $region23: #{tpu_custom_call.1} parent=5 // pred_region
        // Predicated region
        $region25: #{tpu_custom_call.1} parent=23 // pred_check
          %p131 = pneg %p32
        $region26: #{tpu_custom_call.1} parent=23 // pred_check_branch
          %133 = sbr.rel (%p131) target = $region28
        $region27: #{tpu_custom_call.1} parent=23 // pred_region
          %s134 = smul.u32 2, %s12
          %s135 = ssub.s32 7, %s134
          %p136 = scmp.lt.s32.totalorder %s135, 2
          %s137 = scalar_select %p136, %s135, 2
          %s138 = smul.u32 8, %s137
          %p139 = scmp.lt.s32.totalorder %s134, 6
          %s140 = scalar_select %p139, %s134, 6
          %s141 = smul.addr %s140, 8
          %s142 = scalar_lea.vmem %s0, %s141
          %s143 = smul.u32 2, %s12
          %s144 = ssub.s32 7, %s143
          %p145 = scmp.lt.s32.totalorder %s144, 2
          %s146 = scalar_select %p145, %s144, 2
          %s147 = smul.u32 8, %s146
        $region28: #{tpu_custom_call.1} parent=23 // pred_fallthru
          _
      $region24: #{tpu_custom_call.1} parent=5 // pred_fallthru
        _
      %p148 = scmp.le.s32.totalorder 1, %s12
      %p149 = scmp.lt.s32.totalorder %s12, 5
      %p150 = pnand %p148, %p149
      %p151 = pneg %p150
      // Predicated region
      $region29: #{tpu_custom_call.1} parent=5 // pred_check
        _
      $region30: #{tpu_custom_call.1} parent=5 // pred_check_branch
        %153 = sbr.rel (%p150) target = $region32
      $region31: #{tpu_custom_call.1} parent=5 // pred_region
        %s154 = ssub.s32 %s12, 1
        %s155 = smul.u32 2, %s17
        %s156 = ssub.s32 7, %s155
        %p157 = scmp.lt.s32.totalorder %s156, 2
        %s158 = scalar_select %p157, %s156, 2
        %s159 = smul.u32 8, %s158
        %p160 = scmp.lt.s32.totalorder %s155, 6
        %s161 = scalar_select %p160, %s155, 6
        %s162 = smul.addr %s161, 8
        %s163 = scalar_lea.vmem %s0, %s162
        %p164 = pneg %p38
        %p165 = pneg %p35
        %p166 = pneg %p59
        %p167 = pneg %p56
        %p168 = pneg %p80
        %p169 = pneg %p77
        %p170 = pneg %p106
        %p171 = pneg %p103
        %s172 = sand.u32 %s93, 1
        %s173 = scalar_lea.sflag [#allocation3], %s172
        %s174 = sand.u32 %s93, 1
        %s175 = smul.addr %s174, 16
        %s176 = scalar_lea.vmem [#allocation2], %s175
        %s177 = smul.u32 2, %s17
        %s178 = ssub.s32 7, %s177
        %p179 = scmp.lt.s32.totalorder %s178, 2
        %s180 = scalar_select %p179, %s178, 2
        %s181 = smul.u32 8, %s180
        %p182 = scmp.lt.s32.totalorder %s177, 6
        %s183 = scalar_select %p182, %s177, 6
        %s184 = smul.addr %s183, 8
        %s185 = scalar_lea.vmem %s0, %s184
        %s186 = smul.u32 2, %s17
        %s187 = ssub.s32 7, %s186
        %p188 = scmp.lt.s32.totalorder %s187, 2
        %s189 = scalar_select %p188, %s187, 2
        %s190 = smul.u32 8, %s189
        %s191 = smul.u32 2, %s17
        %s192 = ssub.s32 7, %s191
        %p193 = scmp.lt.s32.totalorder %s192, 2
        %s194 = scalar_select %p193, %s192, 2
        %s195 = smul.u32 8, %s194
        %v196 = vld [vmem:[%s185] sm:$0xff]
        %v197 = vld [vmem:[%s185 + $0x8] sm:$0xff]
        %v198 = vld [vmem:[%s1] sm:$0xff]
        %v199 = vld [vmem:[%s1 + $0x8] sm:$0xff]
        %v200 = vld [vmem:[%s1 + $0x10] sm:$0xff]
        %v201 = vld [vmem:[%s1 + $0x18] sm:$0xff]
        %v202 = vld [vmem:[%s1 + $0x20] sm:$0xff]
        %v203 = vld [vmem:[%s1 + $0x28] sm:$0xff]
        %v204 = vld [vmem:[%s1 + $0x30] sm:$0xff]
        %v205 = vld [vmem:[%s1 + $0x38] sm:$0xff]
        %v206 = vld [vmem:[%s1 + $0x40] sm:$0xff]
        %v207 = vld [vmem:[%s1 + $0x48] sm:$0xff]
        %v208 = vld [vmem:[%s1 + $0x50] sm:$0xff]
        %v209 = vld [vmem:[%s1 + $0x58] sm:$0xff]
        %v210 = vld [vmem:[%s1 + $0x60] sm:$0xff]
        %v211 = vld [vmem:[%s1 + $0x68] sm:$0xff]
        %v212 = vld [vmem:[%s1 + $0x70] sm:$0xff]
        %v213 = vld [vmem:[%s1 + $0x78] sm:$0xff]
        %214 = vmatpush.msra.mxu0 %v213
        %215 = vmatpush.msra.mxu0 %v212
        %216 = vmatpush.msra.mxu0 %v211
        %217 = vmatpush.msra.mxu0 %v210
        %218 = vmatpush.msra.mxu0 %v209
        %219 = vmatpush.msra.mxu0 %v208
        %220 = vmatpush.msra.mxu0 %v207
        %221 = vmatpush.msra.mxu0 %v206
        %222 = vmatpush.msra.mxu0 %v205
        %223 = vmatpush.msra.mxu0 %v204
        %224 = vmatpush.msra.mxu0 %v203
        %225 = vmatpush.msra.mxu0 %v202
        %226 = vmatpush.msra.mxu0 %v201
        %227 = vmatpush.msra.mxu0 %v200
        %228 = vmatpush.msra.mxu0 %v199
        %229 = vmatpush.msra.mxu0 %v198
        %230 = vmatmul.f32.gmra.mxu0 %v196
        %v231 = vpop.f32.mrf.mxu0
        %v232 = vadd.f32 0.0, %v231
        %233 = vmatmul.f32.gmra.mxu0 %v197
        %v234 = vpop.f32.mrf.mxu0
        %v235 = vadd.f32 0.0, %v234
        %236 = vdwg.mxu0
        %v237 = vmax.f32 %v232, 0.0
        %v238 = vmax.f32 %v235, 0.0
        %v239 = vld [vmem:[%s2] sm:$0xff]
        %vm240 = vcmask 64512
        %v242 = vsel %vm240, %v237, 0
        %v245 = vsel %vm240, %v238, 0
        %247 = vmatpush.msra.mxu0 0.0
        %248 = vmatpush.msra.mxu0 0.0
        %249 = vmatpush.msra.mxu0 0.0
        %250 = vmatpush.msra.mxu0 0.0
        %251 = vmatpush.msra.mxu0 0.0
        %252 = vmatpush.msra.mxu0 0.0
        %253 = vmatpush.msra.mxu0 0.0
        %254 = vmatpush.msra.mxu0 0.0
        %255 = vmatpush.msra.mxu0 0.0
        %256 = vmatpush.msra.mxu0 0.0
        %257 = vmatpush.msra.mxu0 0.0
        %258 = vmatpush.msra.mxu0 0.0
        %259 = vmatpush.msra.mxu0 0.0
        %260 = vmatpush.msra.mxu0 0.0
        %261 = vmatpush.msra.mxu0 0.0
        %262 = vmatpush.msra.mxu0 %v239
        %263 = vmatmul.f32.gmra.mxu0 %v242
        %v264 = vpop.f32.mrf.mxu0
        %v265 = vadd.f32 0.0, %v264
        %266 = vmatmul.f32.gmra.mxu0 %v245
        %v267 = vpop.f32.mrf.mxu0
        %v268 = vadd.f32 0.0, %v267
        %269 = vdwg.mxu0
        %v270 = vxor.u32 %v265, 2147483648
        %v271 = vxor.u32 %v268, 2147483648
        %v272 = vmul.f32 %v270, 1.442695
        %v273 = vpow.pop %v272
        %v274 = vmul.f32 %v271, 1.442695
        %v275 = vpow.pop %v274
        %v276 = vadd.f32 %v273, 1.0
        %v277 = vadd.f32 %v275, 1.0
        %v278 = vrcp.pop %v276
        %v279 = vmul.f32 %v276, %v278
        %v280 = vsub.f32 1.0, %v279
        %v281 = vmul.f32 %v278, %v280
        %v282 = vadd.f32 %v278, %v281
        %vm283 = vweird.f32 %v276
        %vm284 = vweird.f32 %v278
        %vm285 = vmor %vm283, %vm284
        %v286 = vsel %vm285, %v278, %v282
        %v287 = vand.u32 2147483647, %v276
        %vm288 = vcmp.eq.f32.partialorder %v287, 8.507059e+37
        %v289 = vand.u32 %v276, 2147483648
        %v290 = vor.u32 1.1754944e-38, %v289
        %v291 = vsel %vm288, %v290, %v286
        %v292 = vmul.f32 1.0, %v291
        %v293 = vrcp.pop %v277
        %v294 = vmul.f32 %v277, %v293
        %v295 = vsub.f32 1.0, %v294
        %v296 = vmul.f32 %v293, %v295
        %v297 = vadd.f32 %v293, %v296
        %vm298 = vweird.f32 %v277
        %vm299 = vweird.f32 %v293
        %vm300 = vmor %vm298, %vm299
        %v301 = vsel %vm300, %v293, %v297
        %v302 = vand.u32 2147483647, %v277
        %vm303 = vcmp.eq.f32.partialorder %v302, 8.507059e+37
        %v304 = vand.u32 %v277, 2147483648
        %v305 = vor.u32 1.1754944e-38, %v304
        %v306 = vsel %vm303, %v305, %v301
        %v307 = vmul.f32 1.0, %v306
        %v308 = vmul.f32 %v196, %v292
        %v309 = vmul.f32 %v197, %v307
        %310 = vst [vmem:[%s176] sm:$0xff] %v308
        %311 = vst [vmem:[%s176 + $0x8] sm:$0xff] %v309
        %s312 = sand.u32 %s93, 1
        %s313 = scalar_lea.sflag [#allocation3], %s312
        %s314 = sand.u32 %s93, 1
        %s315 = smul.addr %s314, 16
        %s316 = scalar_lea.vmem [#allocation2], %s315
        // Predicated region
        $region33: #{tpu_custom_call.1} parent=31 // pred_check
          %p317 = pneg %p103
        $region34: #{tpu_custom_call.1} parent=31 // pred_check_branch
          %319 = sbr.rel (%p317) target = $region36
        $region35: #{tpu_custom_call.1} parent=31 // pred_region
          %s320 = smul.u32 2, %s17
          %s321 = ssub.s32 7, %s320
          %p322 = scmp.lt.s32.totalorder %s321, 2
          %s323 = scalar_select %p322, %s321, 2
          %s324 = smul.u32 8, %s323
          %s325 = ssub.s32 16, %s324
          %s326 = sshll.u32 %s325, 4
          %327 = vsyncadd %s313, %s326
          %p328 = scmp.ne.s32.totalorder 0, %s324
          %s329 = smul.addr %s320, 8
          %s330 = scalar_lea.hbm %s3, %s329
          %s331 = smul.u32 8, %s323
          %s332 = sshll.u32 %s316, 4
          %s333 = int_to_ptr.vmem [resolvable:$true] %s332
          %s334 = sshll.u32 %s330, 4
          %s335 = int_to_ptr.hbm [resolvable:$true] %s334
          %s336 = sshll.u32 %s331, 4
          %340 = dma.vmem_to_hbm [thread:$0]  (%p328), %s333, %s336, %s335, %s313, 128, 128, 8
        $region36: #{tpu_custom_call.1} parent=31 // pred_fallthru
          _
      $region32: #{tpu_custom_call.1} parent=5 // pred_fallthru
        _
      %p341 = scmp.le.s32.totalorder 2, %s12
      // Predicated region
      $region37: #{tpu_custom_call.1} parent=5 // pred_check
        %p342 = pneg %p341
      $region38: #{tpu_custom_call.1} parent=5 // pred_check_branch
        %344 = sbr.rel (%p342) target = $region40
      $region39: #{tpu_custom_call.1} parent=5 // pred_region
        %s345 = ssub.s32 %s12, 2
        // Predicated region
        $region41: #{tpu_custom_call.1} parent=39 // pred_check
          %p346 = pneg %p109
        $region42: #{tpu_custom_call.1} parent=39 // pred_check_branch
          %348 = sbr.rel (%p346) target = $region44
        $region43: #{tpu_custom_call.1} parent=39 // pred_region
          %s349 = sand.u32 %s94, 1
          %s350 = scalar_lea.sflag [#allocation3], %s349
          %s351 = sand.u32 %s94, 1
          %s352 = smul.addr %s351, 16
          %s353 = scalar_lea.vmem [#allocation2], %s352
          %355 = dma.done %s350, 256
        $region44: #{tpu_custom_call.1} parent=39 // pred_fallthru
          _
      $region40: #{tpu_custom_call.1} parent=5 // pred_fallthru
        _
    $region6: #{tpu_custom_call.1} parent=1 // loop_footer
      %s16 = sadd.s32 1, %s12
    $region7: #{tpu_custom_call.1} parent=1 // loop_footer_branch
      %11 = sbr.rel target = $region3
    $region8: #{tpu_custom_call.1} parent=1 // loop_exit
      _
    %356 = vsyncpa [#allocation3], 1
    %s357 = scalar_lea.sflag [#allocation3], 1
    %358 = vsyncpa %s357, 1

</llo_original>
